<compile_context>
chip_gen: v6e
topology: v6e:2x2x1
jax: 0.10.0
libtpu: 0.0.40
codegen_flags: <defaults>
</compile_context>

<pallas_src>
import jax
import jax.numpy as jnp
from jax.experimental import pallas as pl
from jax.experimental.pallas import tpu as pltpu


def _round_up(x, m):
    return ((x + m - 1) // m) * m


def _embed_kernel(ids_ref, table_ref, out_ref):
    # ids_ref:   (tile_t, 1) int32  ids for this output tile
    # table_ref: (V, D)      float  whole soft-prompt table (VMEM-resident)
    # out_ref:   (tile_t, D) float  lane-dense output tile for this grid step
    ids = ids_ref[...]                        # (tile_t, 1)
    tbl = table_ref[...]                      # (V, D), V is tiny (~8)
    v = tbl.shape[0]

    acc = jnp.zeros(out_ref.shape, dtype=tbl.dtype)
    # Unrolled (trace-time) compare/select over the tiny soft-prompt vocab:
    # each output row is selected by exactly one v; ids outside [0, V) stay 0.
    for vv in range(v):
        row = tbl[vv][None, :]                # (1, D), static-index row
        acc = jnp.where(ids == vv, row, acc)  # broadcast -> (tile_t, D)

    out_ref[...] = acc.astype(out_ref.dtype)


def soft_prompt_embedding(input_ids, table, *, tile_t=1024):
    """input_ids: [B, S] int, table: [V, D] float -> [B, S, D] float."""
    b, s = input_ids.shape
    v, d = table.shape
    t = b * s

    # Output tiles as large as affordable (mem-bound kernel => amortize the
    # ~0.35us per-grid-step overhead), multiple of 8 sublanes, never larger
    # than the padded problem.  At D=768 (GPT-Neo-125M) a 1024-row f32 tile is
    # 3 MiB; double-buffered ids+output stay well inside default scoped VMEM.
    tile_t = max(8, min(_round_up(tile_t, 8), _round_up(t, 8)))
    t_pad = _round_up(t, tile_t)
    grid_t = t_pad // tile_t

    ids_flat = input_ids.reshape(t).astype(jnp.int32)
    if t_pad != t:
        ids_flat = jnp.pad(ids_flat, (0, t_pad - t))   # pad with id 0 (valid)
    ids_flat = ids_flat.reshape(t_pad, 1)

    out_flat = pl.pallas_call(
        _embed_kernel,
        # Output dtype follows the table dtype; pass a bf16 table to halve
        # HBM writeback bytes if the consuming model runs in bf16.
        out_shape=jax.ShapeDtypeStruct((t_pad, d), table.dtype),
        grid_spec=pltpu.PrefetchScalarGridSpec(
            num_scalar_prefetch=0,
            grid=(grid_t,),
            in_specs=[
                # Per-tile ids stream: bounded VMEM footprint for any T,
                # double-buffered by the Pallas pipeline.
                pl.BlockSpec((tile_t, 1), lambda i: (i, 0)),
                # Constant index_map: whole (tiny) table resident across steps.
                pl.BlockSpec((v, d), lambda i: (0, 0)),
            ],
            out_specs=pl.BlockSpec((tile_t, d), lambda i: (i, 0)),
        ),
        compiler_params=pltpu.CompilerParams(
            # Independent output tiles: lets v7x's second TensorCore take
            # work once T spans >= 2 tiles; neutral on v5e/v6e.
            dimension_semantics=("parallel",),
        ),
    )(ids_flat, table)

    return out_flat[:t].reshape(b, s, d)


if __name__ == "__main__":
    # Module hyperparameters (small, consistent with the forward semantics).
    num_prompts = 8        # soft-prompt "vocab"
    embedding_dim = 128
    batch, seq = 2, 8

    key = jax.random.PRNGKey(0)
    k_table, k_ids = jax.random.split(key)

    # Deterministic parameter init. In the original module the first rows are
    # copied from the pretrained GPT-Neo input embeddings for init_tokens.
    # TODO(synk): no checkpoint/tokenizer here; rows are initialized N(0, 0.02)
    # which preserves the forward-pass semantics (pure table lookup).
    table = 0.02 * jax.random.normal(
        k_table, (num_prompts, embedding_dim), dtype=jnp.float32)

    input_ids = jax.random.randint(
        k_ids, (batch, seq), minval=0, maxval=num_prompts, dtype=jnp.int32)

    out = soft_prompt_embedding(input_ids, table)
    out = jax.block_until_ready(out)

    # Cross-check against plain JAX gather (reference semantics).
    ref = table[input_ids]
    assert out.shape == (batch, seq, embedding_dim)
    assert jnp.allclose(out, ref, atol=1e-6), "mismatch vs reference gather"

    print("KERNEL_OK")
</pallas_src>

<mosaic_0001>
module attributes {stable_mosaic.version = 11 : i64} {
  func.func @_embed_kernel(%arg0: i32, %arg1: memref<16x1xi32, #tpu.memory_space<vmem>>, %arg2: memref<8x128xf32, #tpu.memory_space<vmem>>, %arg3: memref<16x128xf32, #tpu.memory_space<vmem>>) attributes {dimension_semantics = [#tpu.dimension_semantics<parallel>], iteration_bounds = array<i64: 1>, scalar_prefetch = 0 : i64, scratch_operands = 0 : i64, tpu.core_type = #tpu.core_type<tc>, window_params = [{transform_indices = @transform_0, window_bounds = array<i64: 16, 1>}, {pipeline_mode = #tpu.pipeline_mode<synchronous>, transform_indices = @transform_1, window_bounds = array<i64: 8, 128>}, {transform_indices = @transform_2, window_bounds = array<i64: 16, 128>}]} {
    %c0 = arith.constant 0 : index
    %c0_0 = arith.constant 0 : index
    %0 = vector.load %arg1[%c0, %c0_0] : memref<16x1xi32, #tpu.memory_space<vmem>>, vector<16x1xi32>
    %c0_1 = arith.constant 0 : index
    %c0_2 = arith.constant 0 : index
    %1 = vector.load %arg2[%c0_1, %c0_2] : memref<8x128xf32, #tpu.memory_space<vmem>>, vector<8x128xf32>
    %cst = arith.constant 0.000000e+00 : f32
    %2 = vector.broadcast %cst : f32 to vector<16x128xf32>
    %3 = vector.extract_strided_slice %1 {offsets = [0, 0], sizes = [1, 128], strides = [1, 1]} : vector<8x128xf32> to vector<1x128xf32>
    %4 = vector.shape_cast %3 : vector<1x128xf32> to vector<128xf32>
    %5 = vector.shape_cast %4 : vector<128xf32> to vector<1x128xf32>
    %c0_i32 = arith.constant 0 : i32
    %6 = vector.broadcast %c0_i32 : i32 to vector<16x1xi32>
    %7 = arith.cmpi eq, %0, %6 : vector<16x1xi32>
    %8 = vector.shape_cast %7 : vector<16x1xi1> to vector<16x1xi1>
    %9 = vector.broadcast %8 : vector<16x1xi1> to vector<16x128xi1>
    %10 = vector.shape_cast %5 : vector<1x128xf32> to vector<1x128xf32>
    %11 = vector.broadcast %10 : vector<1x128xf32> to vector<16x128xf32>
    %12 = arith.select %9, %11, %2 : vector<16x128xi1>, vector<16x128xf32>
    %13 = vector.extract_strided_slice %1 {offsets = [1, 0], sizes = [1, 128], strides = [1, 1]} : vector<8x128xf32> to vector<1x128xf32>
    %14 = vector.shape_cast %13 : vector<1x128xf32> to vector<128xf32>
    %15 = vector.shape_cast %14 : vector<128xf32> to vector<1x128xf32>
    %c1_i32 = arith.constant 1 : i32
    %16 = vector.broadcast %c1_i32 : i32 to vector<16x1xi32>
    %17 = arith.cmpi eq, %0, %16 : vector<16x1xi32>
    %18 = vector.shape_cast %17 : vector<16x1xi1> to vector<16x1xi1>
    %19 = vector.broadcast %18 : vector<16x1xi1> to vector<16x128xi1>
    %20 = vector.shape_cast %15 : vector<1x128xf32> to vector<1x128xf32>
    %21 = vector.broadcast %20 : vector<1x128xf32> to vector<16x128xf32>
    %22 = arith.select %19, %21, %12 : vector<16x128xi1>, vector<16x128xf32>
    %23 = vector.extract_strided_slice %1 {offsets = [2, 0], sizes = [1, 128], strides = [1, 1]} : vector<8x128xf32> to vector<1x128xf32>
    %24 = vector.shape_cast %23 : vector<1x128xf32> to vector<128xf32>
    %25 = vector.shape_cast %24 : vector<128xf32> to vector<1x128xf32>
    %c2_i32 = arith.constant 2 : i32
    %26 = vector.broadcast %c2_i32 : i32 to vector<16x1xi32>
    %27 = arith.cmpi eq, %0, %26 : vector<16x1xi32>
    %28 = vector.shape_cast %27 : vector<16x1xi1> to vector<16x1xi1>
    %29 = vector.broadcast %28 : vector<16x1xi1> to vector<16x128xi1>
    %30 = vector.shape_cast %25 : vector<1x128xf32> to vector<1x128xf32>
    %31 = vector.broadcast %30 : vector<1x128xf32> to vector<16x128xf32>
    %32 = arith.select %29, %31, %22 : vector<16x128xi1>, vector<16x128xf32>
    %33 = vector.extract_strided_slice %1 {offsets = [3, 0], sizes = [1, 128], strides = [1, 1]} : vector<8x128xf32> to vector<1x128xf32>
    %34 = vector.shape_cast %33 : vector<1x128xf32> to vector<128xf32>
    %35 = vector.shape_cast %34 : vector<128xf32> to vector<1x128xf32>
    %c3_i32 = arith.constant 3 : i32
    %36 = vector.broadcast %c3_i32 : i32 to vector<16x1xi32>
    %37 = arith.cmpi eq, %0, %36 : vector<16x1xi32>
    %38 = vector.shape_cast %37 : vector<16x1xi1> to vector<16x1xi1>
    %39 = vector.broadcast %38 : vector<16x1xi1> to vector<16x128xi1>
    %40 = vector.shape_cast %35 : vector<1x128xf32> to vector<1x128xf32>
    %41 = vector.broadcast %40 : vector<1x128xf32> to vector<16x128xf32>
    %42 = arith.select %39, %41, %32 : vector<16x128xi1>, vector<16x128xf32>
    %43 = vector.extract_strided_slice %1 {offsets = [4, 0], sizes = [1, 128], strides = [1, 1]} : vector<8x128xf32> to vector<1x128xf32>
    %44 = vector.shape_cast %43 : vector<1x128xf32> to vector<128xf32>
    %45 = vector.shape_cast %44 : vector<128xf32> to vector<1x128xf32>
    %c4_i32 = arith.constant 4 : i32
    %46 = vector.broadcast %c4_i32 : i32 to vector<16x1xi32>
    %47 = arith.cmpi eq, %0, %46 : vector<16x1xi32>
    %48 = vector.shape_cast %47 : vector<16x1xi1> to vector<16x1xi1>
    %49 = vector.broadcast %48 : vector<16x1xi1> to vector<16x128xi1>
    %50 = vector.shape_cast %45 : vector<1x128xf32> to vector<1x128xf32>
    %51 = vector.broadcast %50 : vector<1x128xf32> to vector<16x128xf32>
    %52 = arith.select %49, %51, %42 : vector<16x128xi1>, vector<16x128xf32>
    %53 = vector.extract_strided_slice %1 {offsets = [5, 0], sizes = [1, 128], strides = [1, 1]} : vector<8x128xf32> to vector<1x128xf32>
    %54 = vector.shape_cast %53 : vector<1x128xf32> to vector<128xf32>
    %55 = vector.shape_cast %54 : vector<128xf32> to vector<1x128xf32>
    %c5_i32 = arith.constant 5 : i32
    %56 = vector.broadcast %c5_i32 : i32 to vector<16x1xi32>
    %57 = arith.cmpi eq, %0, %56 : vector<16x1xi32>
    %58 = vector.shape_cast %57 : vector<16x1xi1> to vector<16x1xi1>
    %59 = vector.broadcast %58 : vector<16x1xi1> to vector<16x128xi1>
    %60 = vector.shape_cast %55 : vector<1x128xf32> to vector<1x128xf32>
    %61 = vector.broadcast %60 : vector<1x128xf32> to vector<16x128xf32>
    %62 = arith.select %59, %61, %52 : vector<16x128xi1>, vector<16x128xf32>
    %63 = vector.extract_strided_slice %1 {offsets = [6, 0], sizes = [1, 128], strides = [1, 1]} : vector<8x128xf32> to vector<1x128xf32>
    %64 = vector.shape_cast %63 : vector<1x128xf32> to vector<128xf32>
    %65 = vector.shape_cast %64 : vector<128xf32> to vector<1x128xf32>
    %c6_i32 = arith.constant 6 : i32
    %66 = vector.broadcast %c6_i32 : i32 to vector<16x1xi32>
    %67 = arith.cmpi eq, %0, %66 : vector<16x1xi32>
    %68 = vector.shape_cast %67 : vector<16x1xi1> to vector<16x1xi1>
    %69 = vector.broadcast %68 : vector<16x1xi1> to vector<16x128xi1>
    %70 = vector.shape_cast %65 : vector<1x128xf32> to vector<1x128xf32>
    %71 = vector.broadcast %70 : vector<1x128xf32> to vector<16x128xf32>
    %72 = arith.select %69, %71, %62 : vector<16x128xi1>, vector<16x128xf32>
    %73 = vector.extract_strided_slice %1 {offsets = [7, 0], sizes = [1, 128], strides = [1, 1]} : vector<8x128xf32> to vector<1x128xf32>
    %74 = vector.shape_cast %73 : vector<1x128xf32> to vector<128xf32>
    %75 = vector.shape_cast %74 : vector<128xf32> to vector<1x128xf32>
    %c7_i32 = arith.constant 7 : i32
    %76 = vector.broadcast %c7_i32 : i32 to vector<16x1xi32>
    %77 = arith.cmpi eq, %0, %76 : vector<16x1xi32>
    %78 = vector.shape_cast %77 : vector<16x1xi1> to vector<16x1xi1>
    %79 = vector.broadcast %78 : vector<16x1xi1> to vector<16x128xi1>
    %80 = vector.shape_cast %75 : vector<1x128xf32> to vector<1x128xf32>
    %81 = vector.broadcast %80 : vector<1x128xf32> to vector<16x128xf32>
    %82 = arith.select %79, %81, %72 : vector<16x128xi1>, vector<16x128xf32>
    %c0_3 = arith.constant 0 : index
    %c0_4 = arith.constant 0 : index
    %83 = vector.load %arg3[%c0_3, %c0_4] : memref<16x128xf32, #tpu.memory_space<vmem>>, vector<16x128xf32>
    tpu.vector_store %arg3[%c0_3, %c0_4], %82 {strides = array<i32>} : memref<16x128xf32, #tpu.memory_space<vmem>>, vector<16x128xf32>,
    return
  }
  func.func @transform_0(%arg0: i32) -> (i32, i32) {
    %c0_i32 = arith.constant 0 : i32
    %c0_i32_0 = arith.constant 0 : i32
    return %arg0, %c0_i32 : i32, i32
  }
  func.func @transform_1(%arg0: i32) -> (i32, i32) {
    %c0_i32 = arith.constant 0 : i32
    %c0_i32_0 = arith.constant 0 : i32
    %c0_i32_1 = arith.constant 0 : i32
    return %c0_i32, %c0_i32_0 : i32, i32
  }
  func.func @transform_2(%arg0: i32) -> (i32, i32) {
    %c0_i32 = arith.constant 0 : i32
    %c0_i32_0 = arith.constant 0 : i32
    return %arg0, %c0_i32 : i32, i32
  }
}

</mosaic_0001>

<llo_original>
// kernel: tpu_custom_call.1
$region0: #{tpu_custom_call.1}
  #allocation0 [shape = 'u32[]', space=smem, size = 0x4, offset = 0x4, fixed_abs, tag = 'smem constant byte address 0x4 - core index']
  #allocation1 [shape = 'u32[144,128]{1,0:T(1,128)}', space=vmem, size = 0x12000, scoped, tag = 'internal scratch']
  %s0 = inlined_call_operand.vmem [shape: s32[16,1], index: 0, kind: input, shape index: {}]
  %s1 = inlined_call_operand.vmem [shape: f32[8,128], index: 1, kind: input, shape index: {}]
  %s2 = inlined_call_operand.hbm [shape: f32[16,128], index: 2, kind: output, shape index: {}]
  %s3 = sld [smem:[#allocation0]]
  $region18: #{tpu_custom_call.1} parent=0
    _
  %s5 = ssub.s32 1, %s3
  %s6 = scalar_select 0, %s5, %s3
  $region1: #{tpu_custom_call.1} parent=0
    #allocation2 [shape = 'u8[8192]{0}', space=vmem, size = 0x2000, scoped, tag = 'output window, operand 0, single buffered']
    #allocation3 [shape = 's32[1]{0}', space=sflag, size = 0x4, scoped, tag = 'scoped memory for tpu_custom_call.1']
    %7 = vsyncpa [#allocation3], 0
    // Predicated region
    $region2: #{tpu_custom_call.1} parent=1 // pred_check
      _
    $region3: #{tpu_custom_call.1} parent=1 // pred_check_branch
      %9 = sbr.rel (0) target = $region5
    $region4: #{tpu_custom_call.1} parent=1 // pred_region
      _
    $region5: #{tpu_custom_call.1} parent=1 // pred_fallthru
      _
    // Predicated region
    $region6: #{tpu_custom_call.1} parent=1 // pred_check
      _
    $region7: #{tpu_custom_call.1} parent=1 // pred_check_branch
      %11 = sbr.rel (0) target = $region9
    $region8: #{tpu_custom_call.1} parent=1 // pred_region
      _
    $region9: #{tpu_custom_call.1} parent=1 // pred_fallthru
      _
    %v12 = vld [vmem:[%s0] sm:$0xff]
    %v13 = vld [vmem:[%s0 + $0x8] sm:$0xff]
    %v14 = vld [vmem:[%s1] sm:$0xff]
    %vm15 = vcmp.eq.s32.totalorder %v12, 0
    %vm16 = vcmp.eq.s32.totalorder %v13, 0
    %v17 = vsel %vm15, 1, 0
    %v18 = vsel %vm16, 1, 0
    %19 = vset.pattern.permute.xlu0 0
    %20 = vperm.xlu0 %19, %v17
    %v21 = vpop.permute.xlu0 %20
    %22 = vset.pattern.permute.xlu0 0
    %23 = vperm.xlu0 %22, %v18
    %v24 = vpop.permute.xlu0 %23
    %vm25 = vcmp.eq.s32.totalorder %v21, 1
    %vm26 = vcmp.eq.s32.totalorder %v24, 1
    %v27 = vlaneseq
    %v28 = vshrl.u32 %v27, 7
    %v29 = vsub.s32 0, %v28
    %v30 = vrot.slane %v14, %v29
    %v31 = vsel %vm25, %v30, 0.0
    %v32 = vsel %vm26, %v30, 0.0
    %vm33 = vcmp.eq.s32.totalorder %v12, 1
    %vm34 = vcmp.eq.s32.totalorder %v13, 1
    %v35 = vsel %vm33, 1, 0
    %v36 = vsel %vm34, 1, 0
    %37 = vset.pattern.permute.xlu0 0
    %38 = vperm.xlu0 %37, %v35
    %v39 = vpop.permute.xlu0 %38
    %40 = vset.pattern.permute.xlu0 0
    %41 = vperm.xlu0 %40, %v36
    %v42 = vpop.permute.xlu0 %41
    %vm43 = vcmp.eq.s32.totalorder %v39, 1
    %vm44 = vcmp.eq.s32.totalorder %v42, 1
    %v45 = vlaneseq
    %v46 = vshrl.u32 %v45, 7
    %v47 = vsub.s32 1, %v46
    %v48 = vrot.slane %v14, %v47
    %v49 = vsel %vm43, %v48, %v31
    %v50 = vsel %vm44, %v48, %v32
    %vm51 = vcmp.eq.s32.totalorder %v12, 2
    %vm52 = vcmp.eq.s32.totalorder %v13, 2
    %v53 = vsel %vm51, 1, 0
    %v54 = vsel %vm52, 1, 0
    %55 = vset.pattern.permute.xlu0 0
    %56 = vperm.xlu0 %55, %v53
    %v57 = vpop.permute.xlu0 %56
    %58 = vset.pattern.permute.xlu0 0
    %59 = vperm.xlu0 %58, %v54
    %v60 = vpop.permute.xlu0 %59
    %vm61 = vcmp.eq.s32.totalorder %v57, 1
    %vm62 = vcmp.eq.s32.totalorder %v60, 1
    %v63 = vlaneseq
    %v64 = vshrl.u32 %v63, 7
    %v65 = vsub.s32 2, %v64
    %v66 = vrot.slane %v14, %v65
    %v67 = vsel %vm61, %v66, %v49
    %v68 = vsel %vm62, %v66, %v50
    %vm69 = vcmp.eq.s32.totalorder %v12, 3
    %vm70 = vcmp.eq.s32.totalorder %v13, 3
    %v71 = vsel %vm69, 1, 0
    %v72 = vsel %vm70, 1, 0
    %73 = vset.pattern.permute.xlu0 0
    %74 = vperm.xlu0 %73, %v71
    %v75 = vpop.permute.xlu0 %74
    %76 = vset.pattern.permute.xlu0 0
    %77 = vperm.xlu0 %76, %v72
    %v78 = vpop.permute.xlu0 %77
    %vm79 = vcmp.eq.s32.totalorder %v75, 1
    %vm80 = vcmp.eq.s32.totalorder %v78, 1
    %v81 = vlaneseq
    %v82 = vshrl.u32 %v81, 7
    %v83 = vsub.s32 3, %v82
    %v84 = vrot.slane %v14, %v83
    %v85 = vsel %vm79, %v84, %v67
    %v86 = vsel %vm80, %v84, %v68
    %vm87 = vcmp.eq.s32.totalorder %v12, 4
    %vm88 = vcmp.eq.s32.totalorder %v13, 4
    %v89 = vsel %vm87, 1, 0
    %v90 = vsel %vm88, 1, 0
    %91 = vset.pattern.permute.xlu0 0
    %92 = vperm.xlu0 %91, %v89
    %v93 = vpop.permute.xlu0 %92
    %94 = vset.pattern.permute.xlu0 0
    %95 = vperm.xlu0 %94, %v90
    %v96 = vpop.permute.xlu0 %95
    %vm97 = vcmp.eq.s32.totalorder %v93, 1
    %vm98 = vcmp.eq.s32.totalorder %v96, 1
    %v99 = vlaneseq
    %v100 = vshrl.u32 %v99, 7
    %v101 = vsub.s32 4, %v100
    %v102 = vrot.slane %v14, %v101
    %v103 = vsel %vm97, %v102, %v85
    %v104 = vsel %vm98, %v102, %v86
    %vm105 = vcmp.eq.s32.totalorder %v12, 5
    %vm106 = vcmp.eq.s32.totalorder %v13, 5
    %v107 = vsel %vm105, 1, 0
    %v108 = vsel %vm106, 1, 0
    %109 = vset.pattern.permute.xlu0 0
    %110 = vperm.xlu0 %109, %v107
    %v111 = vpop.permute.xlu0 %110
    %112 = vset.pattern.permute.xlu0 0
    %113 = vperm.xlu0 %112, %v108
    %v114 = vpop.permute.xlu0 %113
    %vm115 = vcmp.eq.s32.totalorder %v111, 1
    %vm116 = vcmp.eq.s32.totalorder %v114, 1
    %v117 = vlaneseq
    %v118 = vshrl.u32 %v117, 7
    %v119 = vsub.s32 5, %v118
    %v120 = vrot.slane %v14, %v119
    %v121 = vsel %vm115, %v120, %v103
    %v122 = vsel %vm116, %v120, %v104
    %vm123 = vcmp.eq.s32.totalorder %v12, 6
    %vm124 = vcmp.eq.s32.totalorder %v13, 6
    %v125 = vsel %vm123, 1, 0
    %v126 = vsel %vm124, 1, 0
    %127 = vset.pattern.permute.xlu0 0
    %128 = vperm.xlu0 %127, %v125
    %v129 = vpop.permute.xlu0 %128
    %130 = vset.pattern.permute.xlu0 0
    %131 = vperm.xlu0 %130, %v126
    %v132 = vpop.permute.xlu0 %131
    %vm133 = vcmp.eq.s32.totalorder %v129, 1
    %vm134 = vcmp.eq.s32.totalorder %v132, 1
    %v135 = vlaneseq
    %v136 = vshrl.u32 %v135, 7
    %v137 = vsub.s32 6, %v136
    %v138 = vrot.slane %v14, %v137
    %v139 = vsel %vm133, %v138, %v121
    %v140 = vsel %vm134, %v138, %v122
    %vm141 = vcmp.eq.s32.totalorder %v12, 7
    %vm142 = vcmp.eq.s32.totalorder %v13, 7
    %v143 = vsel %vm141, 1, 0
    %v144 = vsel %vm142, 1, 0
    %145 = vset.pattern.permute.xlu0 0
    %146 = vperm.xlu0 %145, %v143
    %v147 = vpop.permute.xlu0 %146
    %148 = vset.pattern.permute.xlu0 0
    %149 = vperm.xlu0 %148, %v144
    %v150 = vpop.permute.xlu0 %149
    %vm151 = vcmp.eq.s32.totalorder %v147, 1
    %vm152 = vcmp.eq.s32.totalorder %v150, 1
    %v153 = vlaneseq
    %v154 = vshrl.u32 %v153, 7
    %v155 = vsub.s32 7, %v154
    %v156 = vrot.slane %v14, %v155
    %v157 = vsel %vm151, %v156, %v139
    %v158 = vsel %vm152, %v156, %v140
    %159 = vst [vmem:[#allocation2] sm:$0xff] %v157
    %160 = vst [vmem:[#allocation2 + $0x8] sm:$0xff] %v158
    // Predicated region
    $region10: #{tpu_custom_call.1} parent=1 // pred_check
      _
    $region11: #{tpu_custom_call.1} parent=1 // pred_check_branch
      %162 = sbr.rel (0) target = $region13
    $region12: #{tpu_custom_call.1} parent=1 // pred_region
      %s164 = ssub.s32 256, 256
      %165 = vsyncadd [#allocation3], %s164
      %s166 = sshll.u32 [#allocation2], 4
      %s167 = int_to_ptr.vmem [resolvable:$true] %s166
      %172 = dma.vmem_to_hbm [thread:$0]  %s167, 256, %s2, [#allocation3], 128, 128, 8
    $region13: #{tpu_custom_call.1} parent=1 // pred_fallthru
      _
    // Predicated region
    $region14: #{tpu_custom_call.1} parent=1 // pred_check
      _
    $region15: #{tpu_custom_call.1} parent=1 // pred_check_branch
      %174 = sbr.rel (0) target = $region17
    $region16: #{tpu_custom_call.1} parent=1 // pred_region
      %175 = dma.done [#allocation3], 256
    $region17: #{tpu_custom_call.1} parent=1 // pred_fallthru
      _
    %176 = vsyncpa [#allocation3], 1

</llo_original>
